<compile_context>
chip_gen: v5e
topology: v5e:2x2
jax: 0.10.0
libtpu: 0.0.40
codegen_flags: <defaults>
</compile_context>

<pallas_src>
import math

import jax
import jax.numpy as jnp
from jax import lax
from jax.experimental import pallas as pl
from jax.experimental.pallas import tpu as pltpu


_NEG_SLOPE = 0.05


def _make_mlp_kernel(num_hidden_layers: int, has_rest: bool,
                     negative_slope: float = _NEG_SLOPE):
    """Pallas kernel for one per-node MLP, sample axis on the lane axis of
    every intermediate and of the (1, tile_n) output block."""

    def kernel(*refs):
        idx = 0
        x_ref = refs[idx]; idx += 1            # (tile_n, in_dim), sample-major
        w0_ref = refs[idx]; idx += 1           # (hidden, in_dim)
        wrest_ref = None
        if has_rest:
            wrest_ref = refs[idx]; idx += 1    # (L-1, hidden, hidden)
        b_ref = refs[idx]; idx += 1            # (L, hidden, 1)
        wout_ref = refs[idx]; idx += 1         # (hidden, 1)
        bout_ref = refs[idx]; idx += 1         # (1, 1)
        out_ref = refs[idx]                    # (1, tile_n), lane-dense

        # Layer 0: contract the feature axis of the sample-major x tile:
        # (hidden, in_dim) . (tile_n, in_dim)^T -> (hidden, tile_n).
        x = x_ref[...].astype(jnp.float32)
        h = lax.dot_general(
            w0_ref[...].astype(jnp.float32), x,
            dimension_numbers=(((1,), (1,)), ((), ())),
            preferred_element_type=jnp.float32,
        ) + b_ref[0]
        h = jnp.maximum(h, negative_slope * h)

        # Remaining hidden layers: (hidden, hidden) @ (hidden, tile_n) on MXU.
        for j in range(1, num_hidden_layers):
            w = wrest_ref[j - 1].astype(jnp.float32)
            h = jnp.dot(w, h, preferred_element_type=jnp.float32) + b_ref[j]
            h = jnp.maximum(h, negative_slope * h)

        # Output layer: VPU multiply + sublane reduce instead of a (1, hidden)
        # MXU matmul whose result tile would be almost entirely padding.
        out = jnp.sum(h * wout_ref[...], axis=0, keepdims=True) + bout_ref[...]
        out_ref[...] = out.astype(out_ref.dtype)

    return kernel


def _round_up(v: int, m: int) -> int:
    return ((v + m - 1) // m) * m


def _plan_tiles(n: int, in_dim: int, itemsize: int,
                max_tile: int = 4096, x_buf_budget: int = 8 << 20):
    """Sample-axis tiling: the fewest, largest lane-aligned (128-multiple)
    steps such that one x tile stays inside a per-buffer VMEM budget.  Single
    grid step whenever n fits — per-step fixed overhead dominates at MCSL
    problem sizes, so fewer/larger steps is a near-linear win."""
    bytes_per_row = max(1, in_dim * itemsize)
    cap = max(128, (x_buf_budget // bytes_per_row) // 128 * 128)
    max_tile = min(max_tile, cap)
    steps = max(1, -(-n // max_tile))
    tile = _round_up(-(-n // steps), 128)
    return tile, steps, tile * steps


def masked_nn_forward(x, params, *, max_tile=4096):
    """Run the per-node MLP on x (n, in_dim) with a Pallas TPU kernel.

    params: dict with
        'hidden': list of (W_j, b_j), W_j (hidden, in_j), b_j (hidden, 1)
        'out':    (W_out, b_out),     W_out (1, hidden),  b_out (1, 1)
    x may be float32 or bfloat16 (bf16 halves input DMA bytes on v6e/v7x;
    compute/accumulation is float32 either way).  Returns (n, 1) float32.
    """
    n, in_dim = x.shape
    hidden_layers = params["hidden"]
    num_hidden_layers = len(hidden_layers)
    hidden_dim = hidden_layers[0][0].shape[0]
    w_out, b_out = params["out"]

    tile, steps, n_pad = _plan_tiles(n, in_dim, x.dtype.itemsize,
                                     max_tile=max_tile)
    if n_pad != n:
        x = jnp.pad(x, ((0, n_pad - n), (0, 0)))

    # Collapse the per-layer params into a few refs (all hidden layers after
    # the first share the (hidden, hidden) shape; all biases share (hidden,1)).
    w0 = hidden_layers[0][0]                                        # (h, in)
    w_rest = None
    if num_hidden_layers > 1:
        w_rest = jnp.stack([w for (w, _) in hidden_layers[1:]], 0)  # (L-1,h,h)
    b_stack = jnp.stack([b for (_, b) in hidden_layers], 0)         # (L, h, 1)
    w_out_col = w_out.reshape(hidden_dim, 1)                        # (h, 1)

    has_rest = w_rest is not None
    kernel = _make_mlp_kernel(num_hidden_layers, has_rest)

    # x stays sample-major in HBM; only its sample axis is tiled.
    in_specs = [pl.BlockSpec((tile, in_dim), lambda i: (i, 0))]
    operands = [x]

    def _whole(a):
        # Whole-array block, constant index_map -> resident in VMEM across
        # all grid steps.
        in_specs.append(pl.BlockSpec(a.shape, lambda i: (0,) * a.ndim))
        operands.append(a)

    _whole(w0)
    if has_rest:
        _whole(w_rest)
    _whole(b_stack)
    _whole(w_out_col)
    _whole(b_out)

    # Lane-dense output: (1, tile) block of a (1, n_pad) slab.
    out_spec = pl.BlockSpec((1, tile), lambda i: (0, i))

    fn = pl.pallas_call(
        kernel,
        out_shape=jax.ShapeDtypeStruct((1, n_pad), jnp.float32),
        grid=(steps,),
        in_specs=in_specs,
        out_specs=out_spec,
        compiler_params=pltpu.CompilerParams(
            dimension_semantics=("parallel",),
            vmem_limit_bytes=32 * 1024 * 1024,  # portable across v5e/v6e/v7x
        ),
    )
    out_row = fn(*operands)            # (1, n_pad)
    # (1, n) and (n, 1) share the same row-major layout: the reshape is free.
    return out_row[:, :n].reshape(n, 1)


def init_masked_nn_params(mask, num_hidden_layers, hidden_dim, key):
    """Deterministically init per-node MLPs exactly where the mask allows,
    mirroring MaskedNN._init_nn (nodes with zero non-self parents skipped).
    Weights in PyTorch (out, in) layout; biases as columns.
    Returns {str(node): params_dict}."""
    d = mask.shape[0]
    nets = {}
    for i in range(d):
        parents = [int(j) for j in range(d) if int(mask[j, i]) == 1 and j != i]
        first_input_dim = len(parents)
        if first_input_dim == 0:
            continue
        layer_params = []
        for j in range(num_hidden_layers):
            in_dim = first_input_dim if j == 0 else hidden_dim
            key, kw, kb = jax.random.split(key, 3)
            bound = 1.0 / math.sqrt(in_dim)
            w = jax.random.uniform(kw, (hidden_dim, in_dim), jnp.float32,
                                   -bound, bound)
            b = jax.random.uniform(kb, (hidden_dim, 1), jnp.float32,
                                   -bound, bound)
            layer_params.append((w, b))
        key, kw, kb = jax.random.split(key, 3)
        bound = 1.0 / math.sqrt(hidden_dim)
        w_out = jax.random.uniform(kw, (1, hidden_dim), jnp.float32,
                                   -bound, bound)
        b_out = jax.random.uniform(kb, (1, 1), jnp.float32, -bound, bound)
        nets[str(i)] = {
            "parents": parents,
            "hidden": layer_params,
            "out": (w_out, b_out),
        }
    return nets


def reference_forward(x, params, negative_slope=_NEG_SLOPE):
    """Pure-JAX reference in sample-major layout (matches PyTorch x@W.T + b)."""
    h = x
    for (w, b) in params["hidden"]:
        h = h @ w.T + b.T
        h = jnp.where(h > 0, h, negative_slope * h)
    w_out, b_out = params["out"]
    return h @ w_out.T + b_out


if __name__ == "__main__":
    key = jax.random.PRNGKey(0)

    # Small, deterministic setup consistent with the module:
    d = 8                    # number of graph nodes (mask is d x d)
    n = 512                  # number of samples -> single grid step
    num_hidden_layers = 2
    hidden_dim = 32

    # Deterministic DAG-style mask: node i's possible parents are 0..i-1.
    mask = jnp.triu(jnp.ones((d, d), jnp.int32), k=1)

    nets = init_masked_nn_params(mask, num_hidden_layers, hidden_dim, key)
    choice = "5"             # node 5 -> 5 parents -> in_dim = 5
    params = nets[choice]
    parents = params["parents"]

    # Full data matrix (n, d); x passed to forward = parent columns, like the
    # PyTorch caller does for node `choice`.
    key, kx = jax.random.split(key)
    x_full = jax.random.normal(kx, (n, d), jnp.float32)
    x = x_full[:, jnp.array(parents)]

    # 1) Primary f32 run (single grid step, lane-dense output).
    out = masked_nn_forward(x, params)
    out = jax.block_until_ready(out)
    ref = reference_forward(x, params)
    assert out.shape == (n, 1)
    assert jnp.allclose(out, ref, atol=1e-4, rtol=1e-4), float(
        jnp.max(jnp.abs(out - ref)))

    # 2) n not a multiple of 128 -> wrapper pads the sample axis and slices.
    n2 = 300
    x2 = x[:n2]
    out2 = jax.block_until_ready(masked_nn_forward(x2, params))
    ref2 = reference_forward(x2, params)
    assert out2.shape == (n2, 1)
    assert jnp.allclose(out2, ref2, atol=1e-4, rtol=1e-4), float(
        jnp.max(jnp.abs(out2 - ref2)))

    # 3) bf16 input stream (v6e/v7x DMA-byte saving); compute stays f32.
    x_bf16 = x.astype(jnp.bfloat16)
    out_bf16 = jax.block_until_ready(masked_nn_forward(x_bf16, params))
    ref_bf16 = reference_forward(x_bf16.astype(jnp.float32), params)
    assert out_bf16.shape == (n, 1)
    assert jnp.allclose(out_bf16, ref_bf16, atol=1e-4, rtol=1e-4), float(
        jnp.max(jnp.abs(out_bf16 - ref_bf16)))

    print("KERNEL_OK")
</pallas_src>

<mosaic_0001>
module attributes {stable_mosaic.version = 11 : i64} {
  func.func @kernel(%arg0: i32, %arg1: memref<512x5xf32, #tpu.memory_space<vmem>>, %arg2: memref<32x5xf32, #tpu.memory_space<vmem>>, %arg3: memref<1x32x32xf32, #tpu.memory_space<vmem>>, %arg4: memref<2x32x1xf32, #tpu.memory_space<vmem>>, %arg5: memref<32x1xf32, #tpu.memory_space<vmem>>, %arg6: memref<1x1xf32, #tpu.memory_space<vmem>>, %arg7: memref<1x512xf32, #tpu.memory_space<vmem>>) attributes {dimension_semantics = [#tpu.dimension_semantics<parallel>], iteration_bounds = array<i64: 1>, scalar_prefetch = 0 : i64, scratch_operands = 0 : i64, tpu.core_type = #tpu.core_type<tc>, window_params = [{transform_indices = @transform_0, window_bounds = array<i64: 512, 5>}, {pipeline_mode = #tpu.pipeline_mode<synchronous>, transform_indices = @transform_1, window_bounds = array<i64: 32, 5>}, {pipeline_mode = #tpu.pipeline_mode<synchronous>, transform_indices = @transform_2, window_bounds = array<i64: 1, 32, 32>}, {pipeline_mode = #tpu.pipeline_mode<synchronous>, transform_indices = @transform_3, window_bounds = array<i64: 2, 32, 1>}, {pipeline_mode = #tpu.pipeline_mode<synchronous>, transform_indices = @transform_4, window_bounds = array<i64: 32, 1>}, {pipeline_mode = #tpu.pipeline_mode<synchronous>, transform_indices = @transform_5, window_bounds = array<i64: 1, 1>}, {transform_indices = @transform_6, window_bounds = array<i64: 1, 512>}]} {
    %c0 = arith.constant 0 : index
    %c0_0 = arith.constant 0 : index
    %0 = vector.load %arg1[%c0, %c0_0] : memref<512x5xf32, #tpu.memory_space<vmem>>, vector<512x5xf32>
    %c0_1 = arith.constant 0 : index
    %c0_2 = arith.constant 0 : index
    %1 = vector.load %arg2[%c0_1, %c0_2] : memref<32x5xf32, #tpu.memory_space<vmem>>, vector<32x5xf32>
    %cst = arith.constant dense<0.000000e+00> : vector<32x512xf32>
    %2 = tpu.matmul %1, %0, %cst {dimension_numbers = #tpu.dot_dimension_numbers<[1], [1], [0], [0], [0, 0, 1, 0], [], []>} : vector<32x5xf32>, vector<512x5xf32>, vector<32x512xf32> -> vector<32x512xf32>
    %c0_3 = arith.constant 0 : index
    %c0_4 = arith.constant 0 : index
    %c0_5 = arith.constant 0 : index
    %3 = vector.load %arg4[%c0_3, %c0_4, %c0_5] : memref<2x32x1xf32, #tpu.memory_space<vmem>>, vector<1x32x1xf32>
    %4 = vector.shape_cast %3 : vector<1x32x1xf32> to vector<32x1xf32>
    %5 = vector.broadcast %4 : vector<32x1xf32> to vector<32x512xf32>
    %6 = arith.addf %2, %5 : vector<32x512xf32>
    %cst_6 = arith.constant 5.000000e-02 : f32
    %7 = vector.broadcast %cst_6 : f32 to vector<32x512xf32>
    %8 = arith.mulf %7, %6 : vector<32x512xf32>
    %9 = arith.maximumf %6, %8 : vector<32x512xf32>
    %c0_7 = arith.constant 0 : index
    %c0_8 = arith.constant 0 : index
    %c0_9 = arith.constant 0 : index
    %10 = vector.load %arg3[%c0_7, %c0_8, %c0_9] : memref<1x32x32xf32, #tpu.memory_space<vmem>>, vector<1x32x32xf32>
    %11 = vector.shape_cast %10 : vector<1x32x32xf32> to vector<32x32xf32>
    %cst_10 = arith.constant dense<0.000000e+00> : vector<32x512xf32>
    %12 = tpu.matmul %11, %9, %cst_10 {dimension_numbers = #tpu.dot_dimension_numbers<[1], [0], [0], [1], [0, 0, 1, 1], [], []>} : vector<32x32xf32>, vector<32x512xf32>, vector<32x512xf32> -> vector<32x512xf32>
    %c1 = arith.constant 1 : index
    %c0_11 = arith.constant 0 : index
    %c0_12 = arith.constant 0 : index
    %13 = vector.load %arg4[%c1, %c0_11, %c0_12] : memref<2x32x1xf32, #tpu.memory_space<vmem>>, vector<1x32x1xf32>
    %14 = vector.shape_cast %13 : vector<1x32x1xf32> to vector<32x1xf32>
    %15 = vector.broadcast %14 : vector<32x1xf32> to vector<32x512xf32>
    %16 = arith.addf %12, %15 : vector<32x512xf32>
    %cst_13 = arith.constant 5.000000e-02 : f32
    %17 = vector.broadcast %cst_13 : f32 to vector<32x512xf32>
    %18 = arith.mulf %17, %16 : vector<32x512xf32>
    %19 = arith.maximumf %16, %18 : vector<32x512xf32>
    %c0_14 = arith.constant 0 : index
    %c0_15 = arith.constant 0 : index
    %20 = vector.load %arg5[%c0_14, %c0_15] : memref<32x1xf32, #tpu.memory_space<vmem>>, vector<32x1xf32>
    %21 = vector.broadcast %20 : vector<32x1xf32> to vector<32x512xf32>
    %22 = arith.mulf %19, %21 : vector<32x512xf32>
    %cst_16 = arith.constant dense<0.000000e+00> : vector<512xf32>
    %23 = vector.multi_reduction <add>, %22, %cst_16 [0] : vector<32x512xf32> to vector<512xf32>
    %24 = vector.shape_cast %23 : vector<512xf32> to vector<1x512xf32>
    %c0_17 = arith.constant 0 : index
    %c0_18 = arith.constant 0 : index
    %25 = vector.load %arg6[%c0_17, %c0_18] : memref<1x1xf32, #tpu.memory_space<vmem>>, vector<1x1xf32>
    %26 = vector.broadcast %25 : vector<1x1xf32> to vector<1x512xf32>
    %27 = arith.addf %24, %26 : vector<1x512xf32>
    %c0_19 = arith.constant 0 : index
    %c0_20 = arith.constant 0 : index
    %28 = vector.load %arg7[%c0_19, %c0_20] : memref<1x512xf32, #tpu.memory_space<vmem>>, vector<1x512xf32>
    tpu.vector_store %arg7[%c0_19, %c0_20], %27 {strides = array<i32>} : memref<1x512xf32, #tpu.memory_space<vmem>>, vector<1x512xf32>,
    return
  }
  func.func @transform_0(%arg0: i32) -> (i32, i32) {
    %c0_i32 = arith.constant 0 : i32
    %c0_i32_0 = arith.constant 0 : i32
    return %arg0, %c0_i32 : i32, i32
  }
  func.func @transform_1(%arg0: i32) -> (i32, i32) {
    %c0_i32 = arith.constant 0 : i32
    %c0_i32_0 = arith.constant 0 : i32
    %c0_i32_1 = arith.constant 0 : i32
    return %c0_i32, %c0_i32_0 : i32, i32
  }
  func.func @transform_2(%arg0: i32) -> (i32, i32, i32) {
    %c0_i32 = arith.constant 0 : i32
    %c0_i32_0 = arith.constant 0 : i32
    %c0_i32_1 = arith.constant 0 : i32
    %c0_i32_2 = arith.constant 0 : i32
    return %c0_i32, %c0_i32_0, %c0_i32_1 : i32, i32, i32
  }
  func.func @transform_3(%arg0: i32) -> (i32, i32, i32) {
    %c0_i32 = arith.constant 0 : i32
    %c0_i32_0 = arith.constant 0 : i32
    %c0_i32_1 = arith.constant 0 : i32
    %c0_i32_2 = arith.constant 0 : i32
    return %c0_i32, %c0_i32_0, %c0_i32_1 : i32, i32, i32
  }
  func.func @transform_4(%arg0: i32) -> (i32, i32) {
    %c0_i32 = arith.constant 0 : i32
    %c0_i32_0 = arith.constant 0 : i32
    %c0_i32_1 = arith.constant 0 : i32
    return %c0_i32, %c0_i32_0 : i32, i32
  }
  func.func @transform_5(%arg0: i32) -> (i32, i32) {
    %c0_i32 = arith.constant 0 : i32
    %c0_i32_0 = arith.constant 0 : i32
    %c0_i32_1 = arith.constant 0 : i32
    return %c0_i32, %c0_i32_0 : i32, i32
  }
  func.func @transform_6(%arg0: i32) -> (i32, i32) {
    %c0_i32 = arith.constant 0 : i32
    %c0_i32_0 = arith.constant 0 : i32
    return %c0_i32, %arg0 : i32, i32
  }
}

</mosaic_0001>

<llo_original>
// kernel: tpu_custom_call.1
$region0: #{tpu_custom_call.1}
  #allocation0 [shape = 'u32[]', space=smem, size = 0x4, offset = 0x4, fixed_abs, tag = 'smem constant byte address 0x4 - core index']
  #allocation1 [shape = 'u32[72,128]{1,0:T(1,128)}', space=vmem, size = 0x9000, scoped, tag = 'internal scratch']
  #allocation2 [shape = 'f32[1,1]{1,0:T(1,128)S(1)}', space=vmem, size = 0x200, scoped, tag = 'scoped memory for tpu_custom_call.1']
  %s0 = inlined_call_operand.vmem [shape: f32[512,5], index: 0, kind: input, shape index: {}]
  %s1 = inlined_call_operand.vmem [shape: f32[32,5], index: 1, kind: input, shape index: {}]
  %s2 = inlined_call_operand.vmem [shape: f32[1,32,32], index: 2, kind: input, shape index: {}]
  %s3 = inlined_call_operand.vmem [shape: f32[2,32,1], index: 3, kind: input, shape index: {}]
  %s4 = inlined_call_operand.vmem [shape: f32[32,1], index: 4, kind: input, shape index: {}]
  %s5 = inlined_call_operand.<no memory space> [shape: f32[1,1], index: 5, kind: input, shape index: {}]
  %s6 = inlined_call_operand.hbm [shape: f32[1,512], index: 6, kind: output, shape index: {}]
  %s7 = sld [smem:[#allocation0]]
  $region34: #{tpu_custom_call.1} parent=0
    _
  %s9 = ssub.s32 1, %s7
  %s10 = scalar_select 0, %s9, %s7
  %v11 = vstv %s5
  %12 = vst [vmem:[#allocation2] sm:$0x1] %v11
  $region1: #{tpu_custom_call.1} parent=0
    #allocation3 [shape = 'u8[2048]{0}', space=vmem, size = 0x800, scoped, tag = 'output window, operand 0, single buffered']
    #allocation4 [shape = 's32[1]{0}', space=sflag, size = 0x4, scoped, tag = 'scoped memory for tpu_custom_call.1']
    %13 = vsyncpa [#allocation4], 0
    // Predicated region
    $region2: #{tpu_custom_call.1} parent=1 // pred_check
      _
    $region3: #{tpu_custom_call.1} parent=1 // pred_check_branch
      %15 = sbr.rel (0) target = $region5
    $region4: #{tpu_custom_call.1} parent=1 // pred_region
      _
    $region5: #{tpu_custom_call.1} parent=1 // pred_fallthru
      _
    // Predicated region
    $region6: #{tpu_custom_call.1} parent=1 // pred_check
      _
    $region7: #{tpu_custom_call.1} parent=1 // pred_check_branch
      %17 = sbr.rel (0) target = $region9
    $region8: #{tpu_custom_call.1} parent=1 // pred_region
      _
    $region9: #{tpu_custom_call.1} parent=1 // pred_fallthru
      _
    // Predicated region
    $region10: #{tpu_custom_call.1} parent=1 // pred_check
      _
    $region11: #{tpu_custom_call.1} parent=1 // pred_check_branch
      %19 = sbr.rel (0) target = $region13
    $region12: #{tpu_custom_call.1} parent=1 // pred_region
      _
    $region13: #{tpu_custom_call.1} parent=1 // pred_fallthru
      _
    // Predicated region
    $region14: #{tpu_custom_call.1} parent=1 // pred_check
      _
    $region15: #{tpu_custom_call.1} parent=1 // pred_check_branch
      %21 = sbr.rel (0) target = $region17
    $region16: #{tpu_custom_call.1} parent=1 // pred_region
      _
    $region17: #{tpu_custom_call.1} parent=1 // pred_fallthru
      _
    // Predicated region
    $region18: #{tpu_custom_call.1} parent=1 // pred_check
      _
    $region19: #{tpu_custom_call.1} parent=1 // pred_check_branch
      %23 = sbr.rel (0) target = $region21
    $region20: #{tpu_custom_call.1} parent=1 // pred_region
      _
    $region21: #{tpu_custom_call.1} parent=1 // pred_fallthru
      _
    // Predicated region
    $region22: #{tpu_custom_call.1} parent=1 // pred_check
      _
    $region23: #{tpu_custom_call.1} parent=1 // pred_check_branch
      %25 = sbr.rel (0) target = $region25
    $region24: #{tpu_custom_call.1} parent=1 // pred_region
      _
    $region25: #{tpu_custom_call.1} parent=1 // pred_fallthru
      _
    %v26 = vld [vmem:[%s0] sm:$0xff]
    %v27 = vld [vmem:[%s0 + $0x8] sm:$0xff]
    %v28 = vld [vmem:[%s0 + $0x10] sm:$0xff]
    %v29 = vld [vmem:[%s0 + $0x18] sm:$0xff]
    %v30 = vld [vmem:[%s0 + $0x20] sm:$0xff]
    %v31 = vld [vmem:[%s0 + $0x28] sm:$0xff]
    %v32 = vld [vmem:[%s0 + $0x30] sm:$0xff]
    %v33 = vld [vmem:[%s0 + $0x38] sm:$0xff]
    %v34 = vld [vmem:[%s0 + $0x40] sm:$0xff]
    %v35 = vld [vmem:[%s0 + $0x48] sm:$0xff]
    %v36 = vld [vmem:[%s0 + $0x50] sm:$0xff]
    %v37 = vld [vmem:[%s0 + $0x58] sm:$0xff]
    %v38 = vld [vmem:[%s0 + $0x60] sm:$0xff]
    %v39 = vld [vmem:[%s0 + $0x68] sm:$0xff]
    %v40 = vld [vmem:[%s0 + $0x70] sm:$0xff]
    %v41 = vld [vmem:[%s0 + $0x78] sm:$0xff]
    %v42 = vld [vmem:[%s0 + $0x80] sm:$0xff]
    %v43 = vld [vmem:[%s0 + $0x88] sm:$0xff]
    %v44 = vld [vmem:[%s0 + $0x90] sm:$0xff]
    %v45 = vld [vmem:[%s0 + $0x98] sm:$0xff]
    %v46 = vld [vmem:[%s0 + $0xa0] sm:$0xff]
    %v47 = vld [vmem:[%s0 + $0xa8] sm:$0xff]
    %v48 = vld [vmem:[%s0 + $0xb0] sm:$0xff]
    %v49 = vld [vmem:[%s0 + $0xb8] sm:$0xff]
    %v50 = vld [vmem:[%s0 + $0xc0] sm:$0xff]
    %v51 = vld [vmem:[%s0 + $0xc8] sm:$0xff]
    %v52 = vld [vmem:[%s0 + $0xd0] sm:$0xff]
    %v53 = vld [vmem:[%s0 + $0xd8] sm:$0xff]
    %v54 = vld [vmem:[%s0 + $0xe0] sm:$0xff]
    %v55 = vld [vmem:[%s0 + $0xe8] sm:$0xff]
    %v56 = vld [vmem:[%s0 + $0xf0] sm:$0xff]
    %v57 = vld [vmem:[%s0 + $0xf8] sm:$0xff]
    %v58 = vld [vmem:[%s0 + $0x100] sm:$0xff]
    %v59 = vld [vmem:[%s0 + $0x108] sm:$0xff]
    %v60 = vld [vmem:[%s0 + $0x110] sm:$0xff]
    %v61 = vld [vmem:[%s0 + $0x118] sm:$0xff]
    %v62 = vld [vmem:[%s0 + $0x120] sm:$0xff]
    %v63 = vld [vmem:[%s0 + $0x128] sm:$0xff]
    %v64 = vld [vmem:[%s0 + $0x130] sm:$0xff]
    %v65 = vld [vmem:[%s0 + $0x138] sm:$0xff]
    %v66 = vld [vmem:[%s0 + $0x140] sm:$0xff]
    %v67 = vld [vmem:[%s0 + $0x148] sm:$0xff]
    %v68 = vld [vmem:[%s0 + $0x150] sm:$0xff]
    %v69 = vld [vmem:[%s0 + $0x158] sm:$0xff]
    %v70 = vld [vmem:[%s0 + $0x160] sm:$0xff]
    %v71 = vld [vmem:[%s0 + $0x168] sm:$0xff]
    %v72 = vld [vmem:[%s0 + $0x170] sm:$0xff]
    %v73 = vld [vmem:[%s0 + $0x178] sm:$0xff]
    %v74 = vld [vmem:[%s0 + $0x180] sm:$0xff]
    %v75 = vld [vmem:[%s0 + $0x188] sm:$0xff]
    %v76 = vld [vmem:[%s0 + $0x190] sm:$0xff]
    %v77 = vld [vmem:[%s0 + $0x198] sm:$0xff]
    %v78 = vld [vmem:[%s0 + $0x1a0] sm:$0xff]
    %v79 = vld [vmem:[%s0 + $0x1a8] sm:$0xff]
    %v80 = vld [vmem:[%s0 + $0x1b0] sm:$0xff]
    %v81 = vld [vmem:[%s0 + $0x1b8] sm:$0xff]
    %v82 = vld [vmem:[%s0 + $0x1c0] sm:$0xff]
    %v83 = vld [vmem:[%s0 + $0x1c8] sm:$0xff]
    %v84 = vld [vmem:[%s0 + $0x1d0] sm:$0xff]
    %v85 = vld [vmem:[%s0 + $0x1d8] sm:$0xff]
    %v86 = vld [vmem:[%s0 + $0x1e0] sm:$0xff]
    %v87 = vld [vmem:[%s0 + $0x1e8] sm:$0xff]
    %v88 = vld [vmem:[%s0 + $0x1f0] sm:$0xff]
    %v89 = vld [vmem:[%s0 + $0x1f8] sm:$0xff]
    %v90 = vld [vmem:[%s1] sm:$0xff]
    %v91 = vld [vmem:[%s1 + $0x8] sm:$0xff]
    %v92 = vld [vmem:[%s1 + $0x10] sm:$0xff]
    %v93 = vld [vmem:[%s1 + $0x18] sm:$0xff]
    %v94 = vld [vmem:[%s3] sm:$0xff]
    %v95 = vld [vmem:[%s3 + $0x8] sm:$0xff]
    %v96 = vld [vmem:[%s3 + $0x10] sm:$0xff]
    %v97 = vld [vmem:[%s3 + $0x18] sm:$0xff]
    %99 = vset.pattern.permute.xlu0 0
    %100 = vperm.xlu0 %99, %v94
    %v101 = vpop.permute.xlu0 %100
    %104 = vset.pattern.permute.xlu0 0
    %105 = vperm.xlu0 %104, %v95
    %v106 = vpop.permute.xlu0 %105
    %109 = vset.pattern.permute.xlu0 0
    %110 = vperm.xlu0 %109, %v96
    %v111 = vpop.permute.xlu0 %110
    %114 = vset.pattern.permute.xlu0 0
    %115 = vperm.xlu0 %114, %v97
    %v116 = vpop.permute.xlu0 %115
    %vm118 = vcmask 39936
    %v120 = vsel %vm118, %v90, 0
    %v123 = vsel %vm118, %v91, 0
    %v126 = vsel %vm118, %v92, 0
    %v129 = vsel %vm118, %v93, 0
    %v132 = vsel %vm118, %v26, 0
    %v135 = vsel %vm118, %v27, 0
    %v138 = vsel %vm118, %v28, 0
    %v141 = vsel %vm118, %v29, 0
    %v144 = vsel %vm118, %v30, 0
    %v147 = vsel %vm118, %v31, 0
    %v150 = vsel %vm118, %v32, 0
    %v153 = vsel %vm118, %v33, 0
    %v156 = vsel %vm118, %v34, 0
    %v159 = vsel %vm118, %v35, 0
    %v162 = vsel %vm118, %v36, 0
    %v165 = vsel %vm118, %v37, 0
    %v168 = vsel %vm118, %v38, 0
    %v171 = vsel %vm118, %v39, 0
    %v174 = vsel %vm118, %v40, 0
    %v177 = vsel %vm118, %v41, 0
    %v180 = vsel %vm118, %v42, 0
    %v183 = vsel %vm118, %v43, 0
    %v186 = vsel %vm118, %v44, 0
    %v189 = vsel %vm118, %v45, 0
    %v192 = vsel %vm118, %v46, 0
    %v195 = vsel %vm118, %v47, 0
    %v198 = vsel %vm118, %v48, 0
    %v201 = vsel %vm118, %v49, 0
    %v204 = vsel %vm118, %v50, 0
    %v207 = vsel %vm118, %v51, 0
    %v210 = vsel %vm118, %v52, 0
    %v213 = vsel %vm118, %v53, 0
    %v216 = vsel %vm118, %v54, 0
    %v219 = vsel %vm118, %v55, 0
    %v222 = vsel %vm118, %v56, 0
    %v225 = vsel %vm118, %v57, 0
    %v228 = vsel %vm118, %v58, 0
    %v231 = vsel %vm118, %v59, 0
    %v234 = vsel %vm118, %v60, 0
    %v237 = vsel %vm118, %v61, 0
    %v240 = vsel %vm118, %v62, 0
    %v243 = vsel %vm118, %v63, 0
    %v246 = vsel %vm118, %v64, 0
    %v249 = vsel %vm118, %v65, 0
    %v252 = vsel %vm118, %v66, 0
    %v255 = vsel %vm118, %v67, 0
    %v258 = vsel %vm118, %v68, 0
    %v261 = vsel %vm118, %v69, 0
    %v264 = vsel %vm118, %v70, 0
    %v267 = vsel %vm118, %v71, 0
    %v270 = vsel %vm118, %v72, 0
    %v273 = vsel %vm118, %v73, 0
    %v276 = vsel %vm118, %v74, 0
    %v279 = vsel %vm118, %v75, 0
    %v282 = vsel %vm118, %v76, 0
    %v285 = vsel %vm118, %v77, 0
    %v288 = vsel %vm118, %v78, 0
    %v291 = vsel %vm118, %v79, 0
    %v294 = vsel %vm118, %v80, 0
    %v297 = vsel %vm118, %v81, 0
    %v300 = vsel %vm118, %v82, 0
    %v303 = vsel %vm118, %v83, 0
    %v306 = vsel %vm118, %v84, 0
    %v309 = vsel %vm118, %v85, 0
    %v312 = vsel %vm118, %v86, 0
    %v315 = vsel %vm118, %v87, 0
    %v318 = vsel %vm118, %v88, 0
    %v321 = vsel %vm118, %v89, 0
    %323 = vmatpush.xpose.msra.mxu0 %v177
    %324 = vmatpush.xpose.msra.mxu0 %v174
    %325 = vmatpush.xpose.msra.mxu0 %v171
    %326 = vmatpush.xpose.msra.mxu0 %v168
    %327 = vmatpush.xpose.msra.mxu0 %v165
    %328 = vmatpush.xpose.msra.mxu0 %v162
    %329 = vmatpush.xpose.msra.mxu0 %v159
    %330 = vmatpush.xpose.msra.mxu0 %v156
    %331 = vmatpush.xpose.msra.mxu0 %v153
    %332 = vmatpush.xpose.msra.mxu0 %v150
    %333 = vmatpush.xpose.msra.mxu0 %v147
    %334 = vmatpush.xpose.msra.mxu0 %v144
    %335 = vmatpush.xpose.msra.mxu0 %v141
    %336 = vmatpush.xpose.msra.mxu0 %v138
    %337 = vmatpush.xpose.msra.mxu0 %v135
    %338 = vmatpush.xpose.msra.mxu0 %v132
    %339 = vmatmul.f32.gmra.mxu0 %v120
    %v340 = vpop.f32.mrf.mxu0
    %v341 = vadd.f32 %v101, %v340
    %342 = vmatmul.f32.gmra.mxu0 %v123
    %v343 = vpop.f32.mrf.mxu0
    %v344 = vadd.f32 %v106, %v343
    %345 = vmatmul.f32.gmra.mxu0 %v126
    %v346 = vpop.f32.mrf.mxu0
    %v347 = vadd.f32 %v111, %v346
    %348 = vmatmul.f32.gmra.mxu0 %v129
    %v349 = vpop.f32.mrf.mxu0
    %v350 = vadd.f32 %v116, %v349
    %351 = vdwg.mxu0
    %352 = vmatpush.xpose.msra.mxu0 %v225
    %353 = vmatpush.xpose.msra.mxu0 %v222
    %354 = vmatpush.xpose.msra.mxu0 %v219
    %355 = vmatpush.xpose.msra.mxu0 %v216
    %356 = vmatpush.xpose.msra.mxu0 %v213
    %357 = vmatpush.xpose.msra.mxu0 %v210
    %358 = vmatpush.xpose.msra.mxu0 %v207
    %359 = vmatpush.xpose.msra.mxu0 %v204
    %360 = vmatpush.xpose.msra.mxu0 %v201
    %361 = vmatpush.xpose.msra.mxu0 %v198
    %362 = vmatpush.xpose.msra.mxu0 %v195
    %363 = vmatpush.xpose.msra.mxu0 %v192
    %364 = vmatpush.xpose.msra.mxu0 %v189
    %365 = vmatpush.xpose.msra.mxu0 %v186
    %366 = vmatpush.xpose.msra.mxu0 %v183
    %367 = vmatpush.xpose.msra.mxu0 %v180
    %368 = vmatmul.f32.gmra.mxu0 %v120
    %v369 = vpop.f32.mrf.mxu0
    %v370 = vadd.f32 %v101, %v369
    %371 = vmatmul.f32.gmra.mxu0 %v123
    %v372 = vpop.f32.mrf.mxu0
    %v373 = vadd.f32 %v106, %v372
    %374 = vmatmul.f32.gmra.mxu0 %v126
    %v375 = vpop.f32.mrf.mxu0
    %v376 = vadd.f32 %v111, %v375
    %377 = vmatmul.f32.gmra.mxu0 %v129
    %v378 = vpop.f32.mrf.mxu0
    %v379 = vadd.f32 %v116, %v378
    %380 = vdwg.mxu0
    %381 = vmatpush.xpose.msra.mxu0 %v273
    %382 = vmatpush.xpose.msra.mxu0 %v270
    %383 = vmatpush.xpose.msra.mxu0 %v267
    %384 = vmatpush.xpose.msra.mxu0 %v264
    %385 = vmatpush.xpose.msra.mxu0 %v261
    %386 = vmatpush.xpose.msra.mxu0 %v258
    %387 = vmatpush.xpose.msra.mxu0 %v255
    %388 = vmatpush.xpose.msra.mxu0 %v252
    %389 = vmatpush.xpose.msra.mxu0 %v249
    %390 = vmatpush.xpose.msra.mxu0 %v246
    %391 = vmatpush.xpose.msra.mxu0 %v243
    %392 = vmatpush.xpose.msra.mxu0 %v240
    %393 = vmatpush.xpose.msra.mxu0 %v237
    %394 = vmatpush.xpose.msra.mxu0 %v234
    %395 = vmatpush.xpose.msra.mxu0 %v231
    %396 = vmatpush.xpose.msra.mxu0 %v228
    %397 = vmatmul.f32.gmra.mxu0 %v120
    %v398 = vpop.f32.mrf.mxu0
    %v399 = vadd.f32 %v101, %v398
    %400 = vmatmul.f32.gmra.mxu0 %v123
    %v401 = vpop.f32.mrf.mxu0
    %v402 = vadd.f32 %v106, %v401
    %403 = vmatmul.f32.gmra.mxu0 %v126
    %v404 = vpop.f32.mrf.mxu0
    %v405 = vadd.f32 %v111, %v404
    %406 = vmatmul.f32.gmra.mxu0 %v129
    %v407 = vpop.f32.mrf.mxu0
    %v408 = vadd.f32 %v116, %v407
    %409 = vdwg.mxu0
    %410 = vmatpush.xpose.msra.mxu0 %v321
    %411 = vmatpush.xpose.msra.mxu0 %v318
    %412 = vmatpush.xpose.msra.mxu0 %v315
    %413 = vmatpush.xpose.msra.mxu0 %v312
    %414 = vmatpush.xpose.msra.mxu0 %v309
    %415 = vmatpush.xpose.msra.mxu0 %v306
    %416 = vmatpush.xpose.msra.mxu0 %v303
    %417 = vmatpush.xpose.msra.mxu0 %v300
    %418 = vmatpush.xpose.msra.mxu0 %v297
    %419 = vmatpush.xpose.msra.mxu0 %v294
    %420 = vmatpush.xpose.msra.mxu0 %v291
    %421 = vmatpush.xpose.msra.mxu0 %v288
    %422 = vmatpush.xpose.msra.mxu0 %v285
    %423 = vmatpush.xpose.msra.mxu0 %v282
    %424 = vmatpush.xpose.msra.mxu0 %v279
    %425 = vmatpush.xpose.msra.mxu0 %v276
    %426 = vmatmul.f32.gmra.mxu0 %v120
    %v427 = vpop.f32.mrf.mxu0
    %v428 = vadd.f32 %v101, %v427
    %429 = vmatmul.f32.gmra.mxu0 %v123
    %v430 = vpop.f32.mrf.mxu0
    %v431 = vadd.f32 %v106, %v430
    %432 = vmatmul.f32.gmra.mxu0 %v126
    %v433 = vpop.f32.mrf.mxu0
    %v434 = vadd.f32 %v111, %v433
    %435 = vmatmul.f32.gmra.mxu0 %v129
    %v436 = vpop.f32.mrf.mxu0
    %v437 = vadd.f32 %v116, %v436
    %438 = vdwg.mxu0
    %v439 = vmul.f32 %v341, 0.05
    %v440 = vmul.f32 %v370, 0.05
    %v441 = vmul.f32 %v399, 0.05
    %v442 = vmul.f32 %v428, 0.05
    %v443 = vmul.f32 %v344, 0.05
    %v444 = vmul.f32 %v373, 0.05
    %v445 = vmul.f32 %v402, 0.05
    %v446 = vmul.f32 %v431, 0.05
    %v447 = vmul.f32 %v347, 0.05
    %v448 = vmul.f32 %v376, 0.05
    %v449 = vmul.f32 %v405, 0.05
    %v450 = vmul.f32 %v434, 0.05
    %v451 = vmul.f32 %v350, 0.05
    %v452 = vmul.f32 %v379, 0.05
    %v453 = vmul.f32 %v408, 0.05
    %v454 = vmul.f32 %v437, 0.05
    %v455 = vmax.f32 %v341, %v439
    %v456 = vmax.f32 %v370, %v440
    %v457 = vmax.f32 %v399, %v441
    %v458 = vmax.f32 %v428, %v442
    %v459 = vmax.f32 %v344, %v443
    %v460 = vmax.f32 %v373, %v444
    %v461 = vmax.f32 %v402, %v445
    %v462 = vmax.f32 %v431, %v446
    %v463 = vmax.f32 %v347, %v447
    %v464 = vmax.f32 %v376, %v448
    %v465 = vmax.f32 %v405, %v449
    %v466 = vmax.f32 %v434, %v450
    %v467 = vmax.f32 %v350, %v451
    %v468 = vmax.f32 %v379, %v452
    %v469 = vmax.f32 %v408, %v453
    %v470 = vmax.f32 %v437, %v454
    %v471 = vld [vmem:[%s2] sm:$0xff]
    %v472 = vld [vmem:[%s2 + $0x8] sm:$0xff]
    %v473 = vld [vmem:[%s2 + $0x10] sm:$0xff]
    %v474 = vld [vmem:[%s2 + $0x18] sm:$0xff]
    %s475 = scalar_lea.vmem %s3, 32
    %v476 = vld [vmem:[%s475] sm:$0xff]
    %v477 = vld [vmem:[%s475 + $0x8] sm:$0xff]
    %v478 = vld [vmem:[%s475 + $0x10] sm:$0xff]
    %v479 = vld [vmem:[%s475 + $0x18] sm:$0xff]
    %481 = vset.pattern.permute.xlu0 0
    %482 = vperm.xlu0 %481, %v476
    %v483 = vpop.permute.xlu0 %482
    %486 = vset.pattern.permute.xlu0 0
    %487 = vperm.xlu0 %486, %v477
    %v488 = vpop.permute.xlu0 %487
    %491 = vset.pattern.permute.xlu0 0
    %492 = vperm.xlu0 %491, %v478
    %v493 = vpop.permute.xlu0 %492
    %496 = vset.pattern.permute.xlu0 0
    %497 = vperm.xlu0 %496, %v479
    %v498 = vpop.permute.xlu0 %497
    %vm500 = vcmask 261120
    %v502 = vsel %vm500, %v471, 0
    %v505 = vsel %vm500, %v472, 0
    %v508 = vsel %vm500, %v473, 0
    %v511 = vsel %vm500, %v474, 0
    %513 = vmatpush.msra.mxu0 0.0
    %514 = vmatpush.msra.mxu0 0.0
    %515 = vmatpush.msra.mxu0 0.0
    %516 = vmatpush.msra.mxu0 0.0
    %517 = vmatpush.msra.mxu0 0.0
    %518 = vmatpush.msra.mxu0 0.0
    %519 = vmatpush.msra.mxu0 0.0
    %520 = vmatpush.msra.mxu0 0.0
    %521 = vmatpush.msra.mxu0 0.0
    %522 = vmatpush.msra.mxu0 0.0
    %523 = vmatpush.msra.mxu0 0.0
    %524 = vmatpush.msra.mxu0 0.0
    %525 = vmatpush.msra.mxu0 %v467
    %526 = vmatpush.msra.mxu0 %v463
    %527 = vmatpush.msra.mxu0 %v459
    %528 = vmatpush.msra.mxu0 %v455
    %529 = vmatmul.f32.gmra.mxu0 %v502
    %v530 = vpop.f32.mrf.mxu0
    %v531 = vadd.f32 %v483, %v530
    %532 = vmatmul.f32.gmra.mxu0 %v505
    %v533 = vpop.f32.mrf.mxu0
    %v534 = vadd.f32 %v488, %v533
    %535 = vmatmul.f32.gmra.mxu0 %v508
    %v536 = vpop.f32.mrf.mxu0
    %v537 = vadd.f32 %v493, %v536
    %538 = vmatmul.f32.gmra.mxu0 %v511
    %v539 = vpop.f32.mrf.mxu0
    %v540 = vadd.f32 %v498, %v539
    %541 = vdwg.mxu0
    %542 = vmatpush.msra.mxu0 0.0
    %543 = vmatpush.msra.mxu0 0.0
    %544 = vmatpush.msra.mxu0 0.0
    %545 = vmatpush.msra.mxu0 0.0
    %546 = vmatpush.msra.mxu0 0.0
    %547 = vmatpush.msra.mxu0 0.0
    %548 = vmatpush.msra.mxu0 0.0
    %549 = vmatpush.msra.mxu0 0.0
    %550 = vmatpush.msra.mxu0 0.0
    %551 = vmatpush.msra.mxu0 0.0
    %552 = vmatpush.msra.mxu0 0.0
    %553 = vmatpush.msra.mxu0 0.0
    %554 = vmatpush.msra.mxu0 %v468
    %555 = vmatpush.msra.mxu0 %v464
    %556 = vmatpush.msra.mxu0 %v460
    %557 = vmatpush.msra.mxu0 %v456
    %558 = vmatmul.f32.gmra.mxu0 %v502
    %v559 = vpop.f32.mrf.mxu0
    %v560 = vadd.f32 %v483, %v559
    %561 = vmatmul.f32.gmra.mxu0 %v505
    %v562 = vpop.f32.mrf.mxu0
    %v563 = vadd.f32 %v488, %v562
    %564 = vmatmul.f32.gmra.mxu0 %v508
    %v565 = vpop.f32.mrf.mxu0
    %v566 = vadd.f32 %v493, %v565
    %567 = vmatmul.f32.gmra.mxu0 %v511
    %v568 = vpop.f32.mrf.mxu0
    %v569 = vadd.f32 %v498, %v568
    %570 = vdwg.mxu0
    %571 = vmatpush.msra.mxu0 0.0
    %572 = vmatpush.msra.mxu0 0.0
    %573 = vmatpush.msra.mxu0 0.0
    %574 = vmatpush.msra.mxu0 0.0
    %575 = vmatpush.msra.mxu0 0.0
    %576 = vmatpush.msra.mxu0 0.0
    %577 = vmatpush.msra.mxu0 0.0
    %578 = vmatpush.msra.mxu0 0.0
    %579 = vmatpush.msra.mxu0 0.0
    %580 = vmatpush.msra.mxu0 0.0
    %581 = vmatpush.msra.mxu0 0.0
    %582 = vmatpush.msra.mxu0 0.0
    %583 = vmatpush.msra.mxu0 %v469
    %584 = vmatpush.msra.mxu0 %v465
    %585 = vmatpush.msra.mxu0 %v461
    %586 = vmatpush.msra.mxu0 %v457
    %587 = vmatmul.f32.gmra.mxu0 %v502
    %v588 = vpop.f32.mrf.mxu0
    %v589 = vadd.f32 %v483, %v588
    %590 = vmatmul.f32.gmra.mxu0 %v505
    %v591 = vpop.f32.mrf.mxu0
    %v592 = vadd.f32 %v488, %v591
    %593 = vmatmul.f32.gmra.mxu0 %v508
    %v594 = vpop.f32.mrf.mxu0
    %v595 = vadd.f32 %v493, %v594
    %596 = vmatmul.f32.gmra.mxu0 %v511
    %v597 = vpop.f32.mrf.mxu0
    %v598 = vadd.f32 %v498, %v597
    %599 = vdwg.mxu0
    %600 = vmatpush.msra.mxu0 0.0
    %601 = vmatpush.msra.mxu0 0.0
    %602 = vmatpush.msra.mxu0 0.0
    %603 = vmatpush.msra.mxu0 0.0
    %604 = vmatpush.msra.mxu0 0.0
    %605 = vmatpush.msra.mxu0 0.0
    %606 = vmatpush.msra.mxu0 0.0
    %607 = vmatpush.msra.mxu0 0.0
    %608 = vmatpush.msra.mxu0 0.0
    %609 = vmatpush.msra.mxu0 0.0
    %610 = vmatpush.msra.mxu0 0.0
    %611 = vmatpush.msra.mxu0 0.0
    %612 = vmatpush.msra.mxu0 %v470
    %613 = vmatpush.msra.mxu0 %v466
    %614 = vmatpush.msra.mxu0 %v462
    %615 = vmatpush.msra.mxu0 %v458
    %616 = vmatmul.f32.gmra.mxu0 %v502
    %v617 = vpop.f32.mrf.mxu0
    %v618 = vadd.f32 %v483, %v617
    %619 = vmatmul.f32.gmra.mxu0 %v505
    %v620 = vpop.f32.mrf.mxu0
    %v621 = vadd.f32 %v488, %v620
    %622 = vmatmul.f32.gmra.mxu0 %v508
    %v623 = vpop.f32.mrf.mxu0
    %v624 = vadd.f32 %v493, %v623
    %625 = vmatmul.f32.gmra.mxu0 %v511
    %v626 = vpop.f32.mrf.mxu0
    %v627 = vadd.f32 %v498, %v626
    %628 = vdwg.mxu0
    %v629 = vmul.f32 %v531, 0.05
    %v630 = vmul.f32 %v560, 0.05
    %v631 = vmul.f32 %v589, 0.05
    %v632 = vmul.f32 %v618, 0.05
    %v633 = vmul.f32 %v534, 0.05
    %v634 = vmul.f32 %v563, 0.05
    %v635 = vmul.f32 %v592, 0.05
    %v636 = vmul.f32 %v621, 0.05
    %v637 = vmul.f32 %v537, 0.05
    %v638 = vmul.f32 %v566, 0.05
    %v639 = vmul.f32 %v595, 0.05
    %v640 = vmul.f32 %v624, 0.05
    %v641 = vmul.f32 %v540, 0.05
    %v642 = vmul.f32 %v569, 0.05
    %v643 = vmul.f32 %v598, 0.05
    %v644 = vmul.f32 %v627, 0.05
    %v645 = vmax.f32 %v531, %v629
    %v646 = vmax.f32 %v560, %v630
    %v647 = vmax.f32 %v589, %v631
    %v648 = vmax.f32 %v618, %v632
    %v649 = vmax.f32 %v534, %v633
    %v650 = vmax.f32 %v563, %v634
    %v651 = vmax.f32 %v592, %v635
    %v652 = vmax.f32 %v621, %v636
    %v653 = vmax.f32 %v537, %v637
    %v654 = vmax.f32 %v566, %v638
    %v655 = vmax.f32 %v595, %v639
    %v656 = vmax.f32 %v624, %v640
    %v657 = vmax.f32 %v540, %v641
    %v658 = vmax.f32 %v569, %v642
    %v659 = vmax.f32 %v598, %v643
    %v660 = vmax.f32 %v627, %v644
    %v661 = vld [vmem:[%s4] sm:$0xff]
    %v662 = vld [vmem:[%s4 + $0x8] sm:$0xff]
    %v663 = vld [vmem:[%s4 + $0x10] sm:$0xff]
    %v664 = vld [vmem:[%s4 + $0x18] sm:$0xff]
    %666 = vset.pattern.permute.xlu0 0
    %667 = vperm.xlu0 %666, %v661
    %v668 = vpop.permute.xlu0 %667
    %671 = vset.pattern.permute.xlu0 0
    %672 = vperm.xlu0 %671, %v662
    %v673 = vpop.permute.xlu0 %672
    %676 = vset.pattern.permute.xlu0 0
    %677 = vperm.xlu0 %676, %v663
    %v678 = vpop.permute.xlu0 %677
    %681 = vset.pattern.permute.xlu0 0
    %682 = vperm.xlu0 %681, %v664
    %v683 = vpop.permute.xlu0 %682
    %v685 = vmul.f32 %v645, %v668
    %v686 = vmul.f32 %v646, %v668
    %v687 = vmul.f32 %v647, %v668
    %v688 = vmul.f32 %v648, %v668
    %v689 = vmul.f32 %v649, %v673
    %v690 = vmul.f32 %v650, %v673
    %v691 = vmul.f32 %v651, %v673
    %v692 = vmul.f32 %v652, %v673
    %v693 = vmul.f32 %v653, %v678
    %v694 = vmul.f32 %v654, %v678
    %v695 = vmul.f32 %v655, %v678
    %v696 = vmul.f32 %v656, %v678
    %v697 = vmul.f32 %v657, %v683
    %v698 = vmul.f32 %v658, %v683
    %v699 = vmul.f32 %v659, %v683
    %v700 = vmul.f32 %v660, %v683
    %v701 = vadd.f32 %v685, %v689
    %v702 = vadd.f32 %v701, %v693
    %v703 = vadd.f32 %v702, %v697
    %v704 = vrot.slane %v703, 4
    %v705 = vadd.f32 %v703, %v704
    %v706 = vrot.slane %v705, 2
    %v707 = vadd.f32 %v705, %v706
    %v708 = vrot.slane %v707, 1
    %v709 = vadd.f32 %v707, %v708
    %v710 = vadd.f32 %v686, %v690
    %v711 = vadd.f32 %v710, %v694
    %v712 = vadd.f32 %v711, %v698
    %v713 = vrot.slane %v712, 4
    %v714 = vadd.f32 %v712, %v713
    %v715 = vrot.slane %v714, 2
    %v716 = vadd.f32 %v714, %v715
    %v717 = vrot.slane %v716, 1
    %v718 = vadd.f32 %v716, %v717
    %v719 = vadd.f32 %v687, %v691
    %v720 = vadd.f32 %v719, %v695
    %v721 = vadd.f32 %v720, %v699
    %v722 = vrot.slane %v721, 4
    %v723 = vadd.f32 %v721, %v722
    %v724 = vrot.slane %v723, 2
    %v725 = vadd.f32 %v723, %v724
    %v726 = vrot.slane %v725, 1
    %v727 = vadd.f32 %v725, %v726
    %v728 = vadd.f32 %v688, %v692
    %v729 = vadd.f32 %v728, %v696
    %v730 = vadd.f32 %v729, %v700
    %v731 = vrot.slane %v730, 4
    %v732 = vadd.f32 %v730, %v731
    %v733 = vrot.slane %v732, 2
    %v734 = vadd.f32 %v732, %v733
    %v735 = vrot.slane %v734, 1
    %v736 = vadd.f32 %v734, %v735
    %v737 = vld [vmem:[#allocation2] sm:$0x1]
    %739 = vset.pattern.permute.xlu0 0
    %740 = vperm.xlu0 %739, %v737
    %v741 = vpop.permute.xlu0 %740
    %v743 = vperm.slane %v741, 0
    %v744 = vadd.f32 %v709, %v743
    %v745 = vadd.f32 %v718, %v743
    %v746 = vadd.f32 %v727, %v743
    %v747 = vadd.f32 %v736, %v743
    %v752 = vrot.slane %v745, 7
    %v753 = vrot.slane %v746, 6
    %v754 = vrot.slane %v747, 5
    %vm755 = vcmask 1040384
    %v756 = vsel %vm755, %v744, %v752
    %vm757 = vcmask 1042434
    %v758 = vsel %vm757, %v753, %v754
    %vm759 = vcmask 1041408
    %v760 = vsel %vm759, %v756, %v758
    %v762 = vlaneseq
    %vm763 = vcmp.ge.s32.totalorder %v762, 0
    %vm764 = vcmp.lt.s32.totalorder %v762, 512
    %vm765 = vmand %vm763, %vm764
    %766 = vst.msk [vmem:[#allocation3] sm:$0xf] %vm765, %v760
    // Predicated region
    $region26: #{tpu_custom_call.1} parent=1 // pred_check
      _
    $region27: #{tpu_custom_call.1} parent=1 // pred_check_branch
      %768 = sbr.rel (0) target = $region29
    $region28: #{tpu_custom_call.1} parent=1 // pred_region
      %770 = vsyncadd [#allocation4], 0
      %s772 = sshll.u32 [#allocation3], 4
      %s773 = int_to_ptr.vmem [resolvable:$true] %s772
      %s774 = sshll.u32 %s6, 4
      %s775 = int_to_ptr.hbm [resolvable:$true] %s774
      %777 = dma.vmem_to_hbm [thread:$0]  %s773, 64, %s775, [#allocation4]
    $region29: #{tpu_custom_call.1} parent=1 // pred_fallthru
      _
    // Predicated region
    $region30: #{tpu_custom_call.1} parent=1 // pred_check
      _
    $region31: #{tpu_custom_call.1} parent=1 // pred_check_branch
      %779 = sbr.rel (0) target = $region33
    $region32: #{tpu_custom_call.1} parent=1 // pred_region
      %781 = dma.done [#allocation4], 64
    $region33: #{tpu_custom_call.1} parent=1 // pred_fallthru
      _
    %782 = vsyncpa [#allocation4], 1

</llo_original>
